<compile_context>
chip_gen: v5e
topology: v5e:2x2
jax: 0.10.0
libtpu: 0.0.40
codegen_flags: <defaults>
</compile_context>

<pallas_src>
import math

import jax
import jax.numpy as jnp
from jax.experimental import pallas as pl
from jax.experimental.pallas import tpu as pltpu

# Above the default scoped limits (16 MiB v5e / 32 MiB v6e,v7x) and below
# v7x's 64 MiB physical capacity, with headroom for internal scratch.
_VMEM_BUDGET_BYTES = 48 * 1024 * 1024


# ----------------------------------------------------------------------------
# Kernel 1: input embedding (time-major rows)
# ----------------------------------------------------------------------------
def _emb_kernel(x_ref, we_ref, be_ref, o_ref):
    """x:[TM,D] -> o:[TM,H] = x @ W_emb^T + b_emb (stored in compute_dtype)."""
    emb = jnp.dot(x_ref[...], we_ref[...],
                  preferred_element_type=jnp.float32) + be_ref[...]
    o_ref[...] = emb.astype(o_ref.dtype)


# ----------------------------------------------------------------------------
# Kernel 2: fused gate-projection + time-chunked GRU recurrence
#           grid = (direction, chunk); direction axis is "parallel" (v7x 2xTC)
# ----------------------------------------------------------------------------
def _bigru_kernel(emb_ref, len_ref, wih_ref, bih_ref, whh_ref, bn_ref, h0_ref,
                  o_ref, gates_ref):
    """One (direction d, time-chunk c) tile per grid iteration.

    emb_ref   : [TM, H]  time-major embedding chunk (chunk c for fwd, NC-1-c for bwd).
    len_ref   : [B, 1]   int32 sequence lengths (resident).
    wih_ref   : [H, 3H]  W_ih^T of direction d (compute_dtype).
    bih_ref   : [1, 3H]  b_ih + b_hh[r,z] of direction d (f32).
    whh_ref   : [H, 3H]  W_hh^T of direction d (compute_dtype).
    bn_ref    : [1, H]   b_hh n-slice of direction d.
    h0_ref    : [1, H]   initial hidden of direction d.
    o_ref     : [B, H]   running hidden of direction d (resident output block).
    gates_ref : [TM, 3H] f32 scratch holding this chunk's input-gate projections.
    """
    B, H = o_ref.shape
    TM = emb_ref.shape[0]
    TC = TM // B
    d = pl.program_id(0)
    c = pl.program_id(1)
    NC = pl.num_programs(1)
    is_fwd = d == 0

    # TODO(synk): h0 could be passed via input_output_aliases instead of this init.
    @pl.when(c == 0)
    def _init():
        o_ref[...] = jnp.broadcast_to(h0_ref[...], (B, H)).astype(o_ref.dtype)

    # Chunk-level gate projection (fused; replaces the old [Tp*B,3H] HBM tensors).
    gates_ref[...] = (
        jnp.dot(emb_ref[...], wih_ref[...], preferred_element_type=jnp.float32)
        + bih_ref[...])

    # TODO(synk): lengths could live in SMEM (scalar prefetch) instead of a 1-lane VMEM block.
    lens = len_ref[...]                      # [B, 1] int32
    whh = whh_ref[...]
    bn = bn_ref[...]
    h = o_ref[...]                           # f32 [B, H]

    # Fully-unrolled chunk loop; only one direction's temporaries live per step.
    for i in range(TC):
        # In-chunk row and global time for this direction.
        row = jnp.where(is_fwd, i, TC - 1 - i)
        t = jnp.where(is_fwd, c * TC + i, (NC - 1 - c) * TC + (TC - 1 - i))
        xg = gates_ref[pl.ds(row * B, B), :]                     # [B, 3H] f32
        hh = jnp.dot(h.astype(whh.dtype), whh,
                     preferred_element_type=jnp.float32)         # [B, 3H] f32
        r = jax.nn.sigmoid(xg[:, :H] + hh[:, :H])
        z = jax.nn.sigmoid(xg[:, H:2 * H] + hh[:, H:2 * H])
        n = jnp.tanh(xg[:, 2 * H:] + r * (hh[:, 2 * H:] + bn))
        h_new = n + z * (h - n)                                  # == (1-z)*n + z*h
        # padded steps keep the previous hidden (pack_padded_sequence semantics)
        h = jnp.where(lens > t, h_new, h)

    o_ref[...] = h


# ----------------------------------------------------------------------------
# Kernel 3: output net (Linear -> LayerNorm -> LeakyReLU(0.2) -> Linear)
# ----------------------------------------------------------------------------
def _outnet_kernel(g_ref, w1_ref, b1_ref, gam_ref, bet_ref, w2_ref, b2_ref, o_ref):
    # g_ref: [2, B, H] (fwd / bwd final hidden); w1_ref: [2, H, H] row-split of W_out1^T.
    h = (jnp.dot(g_ref[0], w1_ref[0], preferred_element_type=jnp.float32)
         + jnp.dot(g_ref[1], w1_ref[1], preferred_element_type=jnp.float32)
         + b1_ref[...])
    mu = jnp.mean(h, axis=-1, keepdims=True)
    var = jnp.mean((h - mu) ** 2, axis=-1, keepdims=True)
    h = (h - mu) * jax.lax.rsqrt(var + 1e-5) * gam_ref[...] + bet_ref[...]
    h = jnp.where(h >= 0.0, h, 0.2 * h)
    o_ref[...] = jnp.dot(h, w2_ref[...],
                         preferred_element_type=jnp.float32) + b2_ref[...]


# ----------------------------------------------------------------------------
# Forward pass wrapper
# ----------------------------------------------------------------------------
def motion_encoder_forward(params, movement_input, motion_lengths, *,
                           time_chunk=8, compute_dtype=jnp.float32):
    B, T, D = movement_input.shape
    H = params["W_emb"].shape[0]
    O = params["W_out2"].shape[0]
    H3 = 3 * H

    # --- time chunk selection: sublane alignment + VMEM budget ---
    esize = jnp.dtype(compute_dtype).itemsize
    align = {4: 8, 2: 16, 1: 32}.get(esize, 8)          # sublane packing of the emb blocks
    step = align // math.gcd(align, B)                   # TC step keeping (TC*B) % align == 0
    TC = max(step, ((int(time_chunk) + step - 1) // step) * step)

    def _rec_vmem_bytes(tc):
        tm = tc * B
        return (2 * tm * H * esize           # emb chunk (double-buffered)
                + tm * H3 * 4                # f32 gate scratch
                + 2 * 2 * H * H3 * esize     # W_ih + W_hh direction blocks (x2 buffers)
                + 2 * B * H * 4              # resident hidden + small blocks
                + (1 << 20))                 # slack
    while TC > step and _rec_vmem_bytes(TC) > _VMEM_BUDGET_BYTES:
        TC -= step

    NC = pl.cdiv(T, TC)
    Tp = NC * TC
    TM = TC * B

    # Time-major rows [Tp*B, D]; the transpose only touches the narrow input.
    x_tm = jnp.transpose(movement_input.astype(jnp.float32), (1, 0, 2))
    if Tp != T:
        x_tm = jnp.pad(x_tm, ((0, Tp - T), (0, 0), (0, 0)))
    x_flat = x_tm.reshape(Tp * B, D).astype(compute_dtype)

    W_emb_T = params["W_emb"].T.astype(compute_dtype)                 # [D, H]
    b_emb = params["b_emb"].reshape(1, H).astype(jnp.float32)

    # ---- kernel 1: embedding ----
    emb = pl.pallas_call(
        _emb_kernel,
        out_shape=jax.ShapeDtypeStruct((Tp * B, H), compute_dtype),
        grid_spec=pltpu.PrefetchScalarGridSpec(
            num_scalar_prefetch=0,
            grid=(NC,),
            in_specs=[
                pl.BlockSpec((TM, D), lambda c: (c, 0)),              # x rows
                pl.BlockSpec((D, H), lambda c: (0, 0)),               # W_emb^T
                pl.BlockSpec((1, H), lambda c: (0, 0)),               # b_emb
            ],
            out_specs=pl.BlockSpec((TM, H), lambda c: (c, 0)),
        ),
        compiler_params=pltpu.CompilerParams(
            dimension_semantics=("parallel",),
            vmem_limit_bytes=_VMEM_BUDGET_BYTES),
    )(x_flat, W_emb_T, b_emb)

    # ---- recurrence weights, stacked over direction ----
    def fold_bias(b_ih, b_hh):
        return b_ih + jnp.concatenate([b_hh[:2 * H], jnp.zeros((H,), b_hh.dtype)])

    W_ih = jnp.stack([params["W_ih_f"].T, params["W_ih_b"].T]).astype(compute_dtype)   # [2,H,3H]
    W_hh = jnp.stack([params["W_hh_f"].T, params["W_hh_b"].T]).astype(compute_dtype)   # [2,H,3H]
    b_gate = jnp.stack([fold_bias(params["b_ih_f"], params["b_hh_f"]),
                        fold_bias(params["b_ih_b"], params["b_hh_b"])]
                       ).reshape(2, 1, H3).astype(jnp.float32)
    b_n = jnp.stack([params["b_hh_f"][2 * H:], params["b_hh_b"][2 * H:]]
                    ).reshape(2, 1, H).astype(jnp.float32)
    h0 = params["hidden0"].astype(jnp.float32)                                         # [2,1,H]
    lengths2d = motion_lengths.astype(jnp.int32).reshape(B, 1)

    # ---- kernel 2: bidirectional GRU (direction axis parallel -> v7x 2 cores) ----
    gru_last = pl.pallas_call(
        _bigru_kernel,
        out_shape=jax.ShapeDtypeStruct((2, B, H), jnp.float32),
        grid_spec=pltpu.PrefetchScalarGridSpec(
            num_scalar_prefetch=0,
            grid=(2, NC),
            in_specs=[
                # fwd walks chunks 0..NC-1, bwd walks NC-1..0
                pl.BlockSpec((TM, H),
                             lambda d, c: (d * (NC - 1 - c) + (1 - d) * c, 0)),
                pl.BlockSpec((B, 1), lambda d, c: (0, 0)),            # lengths
                pl.BlockSpec((None, H, H3), lambda d, c: (d, 0, 0)),  # W_ih^T[d]
                pl.BlockSpec((None, 1, H3), lambda d, c: (d, 0, 0)),  # folded bias[d]
                pl.BlockSpec((None, H, H3), lambda d, c: (d, 0, 0)),  # W_hh^T[d]
                pl.BlockSpec((None, 1, H), lambda d, c: (d, 0, 0)),   # b_hh n-slice[d]
                pl.BlockSpec((None, 1, H), lambda d, c: (d, 0, 0)),   # h0[d]
            ],
            out_specs=pl.BlockSpec((None, B, H), lambda d, c: (d, 0, 0)),
            scratch_shapes=[pltpu.VMEM((TM, H3), jnp.float32)],       # chunk gates
        ),
        compiler_params=pltpu.CompilerParams(
            dimension_semantics=("parallel", "arbitrary"),
            vmem_limit_bytes=_VMEM_BUDGET_BYTES),
    )(emb, lengths2d, W_ih, b_gate, W_hh, b_n, h0)

    # ---- kernel 3: output net ----
    # TODO(synk): could be fused into the last recurrence chunk under pl.when(c == NC-1).
    out = pl.pallas_call(
        _outnet_kernel,
        out_shape=jax.ShapeDtypeStruct((B, O), jnp.float32),
        in_specs=[pl.BlockSpec(memory_space=pltpu.MemorySpace.VMEM)] * 7,
        out_specs=pl.BlockSpec(memory_space=pltpu.MemorySpace.VMEM),
    )(
        gru_last,
        params["W_out1"].T.reshape(2, H, H).astype(jnp.float32),
        params["b_out1"].reshape(1, H).astype(jnp.float32),
        params["ln_gamma"].reshape(1, H).astype(jnp.float32),
        params["ln_beta"].reshape(1, H).astype(jnp.float32),
        params["W_out2"].T.astype(jnp.float32),
        params["b_out2"].reshape(1, O).astype(jnp.float32),
    )
    return out


# ----------------------------------------------------------------------------
# Pure-JAX reference (for correctness check)
# ----------------------------------------------------------------------------
def _ref_forward(params, x, lengths):
    B, T, _ = x.shape
    H = params["W_emb"].shape[0]
    emb = x @ params["W_emb"].T + params["b_emb"]                         # [B,T,H]
    mask = (jnp.arange(T)[:, None] < lengths[None, :]).astype(jnp.float32)[:, :, None]

    def run_dir(xseq_tbh, mask_tb1, w_ih, w_hh, b_ih, b_hh, h0):
        xp = xseq_tbh @ w_ih.T + b_ih                                     # [T,B,3H]

        def step(h, inp):
            xg, m = inp
            hh = h @ w_hh.T + b_hh
            r = jax.nn.sigmoid(xg[:, :H] + hh[:, :H])
            z = jax.nn.sigmoid(xg[:, H:2 * H] + hh[:, H:2 * H])
            n = jnp.tanh(xg[:, 2 * H:] + r * hh[:, 2 * H:])
            h_new = (1.0 - z) * n + z * h
            return m * h_new + (1.0 - m) * h, None

        h, _ = jax.lax.scan(step, h0, (xp, mask_tb1))
        return h

    emb_t = jnp.transpose(emb, (1, 0, 2))                                 # [T,B,H]
    h0f = jnp.tile(params["hidden0"][0], (B, 1))
    h0b = jnp.tile(params["hidden0"][1], (B, 1))
    hf = run_dir(emb_t, mask, params["W_ih_f"], params["W_hh_f"],
                 params["b_ih_f"], params["b_hh_f"], h0f)
    hb = run_dir(emb_t[::-1], mask[::-1], params["W_ih_b"], params["W_hh_b"],
                 params["b_ih_b"], params["b_hh_b"], h0b)
    g = jnp.concatenate([hf, hb], axis=-1)

    h = g @ params["W_out1"].T + params["b_out1"]
    mu = jnp.mean(h, axis=-1, keepdims=True)
    var = jnp.mean((h - mu) ** 2, axis=-1, keepdims=True)
    h = (h - mu) * jax.lax.rsqrt(var + 1e-5) * params["ln_gamma"] + params["ln_beta"]
    h = jnp.where(h >= 0.0, h, 0.2 * h)
    return h @ params["W_out2"].T + params["b_out2"]


# ----------------------------------------------------------------------------
# Deterministic parameter init (shapes from the PyTorch __init__)
# ----------------------------------------------------------------------------
def init_params(key, input_size, hidden_size, output_size):
    H, D, O = hidden_size, input_size, output_size
    ks = jax.random.split(key, 16)

    def uni(k, shape, fan_in):
        bound = 1.0 / jnp.sqrt(fan_in)
        return jax.random.uniform(k, shape, jnp.float32, -bound, bound)

    return {
        # input_emb: Linear(D, H)
        "W_emb": uni(ks[0], (H, D), D), "b_emb": uni(ks[1], (H,), D),
        # GRU forward / backward
        "W_ih_f": uni(ks[2], (3 * H, H), H), "W_hh_f": uni(ks[3], (3 * H, H), H),
        "b_ih_f": uni(ks[4], (3 * H,), H), "b_hh_f": uni(ks[5], (3 * H,), H),
        "W_ih_b": uni(ks[6], (3 * H, H), H), "W_hh_b": uni(ks[7], (3 * H, H), H),
        "b_ih_b": uni(ks[8], (3 * H,), H), "b_hh_b": uni(ks[9], (3 * H,), H),
        # output_net
        "W_out1": uni(ks[10], (H, 2 * H), 2 * H), "b_out1": uni(ks[11], (H,), 2 * H),
        "ln_gamma": jnp.ones((H,), jnp.float32), "ln_beta": jnp.zeros((H,), jnp.float32),
        "W_out2": uni(ks[12], (O, H), H), "b_out2": uni(ks[13], (O,), H),
        # self.hidden parameter: randn(2, 1, H)
        "hidden0": jax.random.normal(ks[14], (2, 1, H), jnp.float32),
    }


# ----------------------------------------------------------------------------
if __name__ == "__main__":
    B, T = 2, 10
    INPUT_SIZE, HIDDEN_SIZE, OUTPUT_SIZE = 16, 32, 24

    key = jax.random.PRNGKey(0)
    k_params, k_x = jax.random.split(key)
    params = init_params(k_params, INPUT_SIZE, HIDDEN_SIZE, OUTPUT_SIZE)

    movement_input = jax.random.normal(k_x, (B, T, INPUT_SIZE), jnp.float32)
    motion_lengths = jnp.array([10, 6], dtype=jnp.int32)  # sorted desc (enforce_sorted)

    # f32 path (tight check vs the pure-JAX reference).
    out = motion_encoder_forward(params, movement_input, motion_lengths,
                                 time_chunk=4, compute_dtype=jnp.float32)
    out = jax.block_until_ready(out)
    ref = jax.block_until_ready(_ref_forward(params, movement_input, motion_lengths))
    assert out.shape == (B, OUTPUT_SIZE)
    assert jnp.allclose(out, ref, rtol=1e-3, atol=1e-3), "f32 mismatch vs JAX reference"

    # bf16 path (recommended default on v6e/v7x): loose tolerance vs the f32 reference.
    out_bf16 = jax.block_until_ready(
        motion_encoder_forward(params, movement_input, motion_lengths,
                               time_chunk=4, compute_dtype=jnp.bfloat16))
    assert out_bf16.shape == (B, OUTPUT_SIZE)
    assert bool(jnp.all(jnp.isfinite(out_bf16)))
    assert jnp.allclose(out_bf16, ref, rtol=2e-1, atol=2e-1), "bf16 path diverged"

    print("KERNEL_OK")
</pallas_src>

<mosaic_0001>
module attributes {stable_mosaic.version = 11 : i64} {
  func.func @_emb_kernel(%arg0: i32, %arg1: memref<8x16xf32, #tpu.memory_space<vmem>>, %arg2: memref<16x32xf32, #tpu.memory_space<vmem>>, %arg3: memref<1x32xf32, #tpu.memory_space<vmem>>, %arg4: memref<8x32xf32, #tpu.memory_space<vmem>>) attributes {dimension_semantics = [#tpu.dimension_semantics<parallel>], iteration_bounds = array<i64: 3>, scalar_prefetch = 0 : i64, scratch_operands = 0 : i64, tpu.core_type = #tpu.core_type<tc>, window_params = [{transform_indices = @transform_0, window_bounds = array<i64: 8, 16>}, {pipeline_mode = #tpu.pipeline_mode<synchronous>, transform_indices = @transform_1, window_bounds = array<i64: 16, 32>}, {pipeline_mode = #tpu.pipeline_mode<synchronous>, transform_indices = @transform_2, window_bounds = array<i64: 1, 32>}, {transform_indices = @transform_3, window_bounds = array<i64: 8, 32>}]} {
    %c0 = arith.constant 0 : index
    %c0_0 = arith.constant 0 : index
    %0 = vector.load %arg1[%c0, %c0_0] : memref<8x16xf32, #tpu.memory_space<vmem>>, vector<8x16xf32>
    %c0_1 = arith.constant 0 : index
    %c0_2 = arith.constant 0 : index
    %1 = vector.load %arg2[%c0_1, %c0_2] : memref<16x32xf32, #tpu.memory_space<vmem>>, vector<16x32xf32>
    %cst = arith.constant dense<0.000000e+00> : vector<8x32xf32>
    %2 = tpu.matmul %0, %1, %cst {dimension_numbers = #tpu.dot_dimension_numbers<[1], [0], [0], [1], [0, 0, 1, 1], [], []>} : vector<8x16xf32>, vector<16x32xf32>, vector<8x32xf32> -> vector<8x32xf32>
    %c0_3 = arith.constant 0 : index
    %c0_4 = arith.constant 0 : index
    %3 = vector.load %arg3[%c0_3, %c0_4] : memref<1x32xf32, #tpu.memory_space<vmem>>, vector<1x32xf32>
    %4 = vector.broadcast %3 : vector<1x32xf32> to vector<8x32xf32>
    %5 = arith.addf %2, %4 : vector<8x32xf32>
    %c0_5 = arith.constant 0 : index
    %c0_6 = arith.constant 0 : index
    %6 = vector.load %arg4[%c0_5, %c0_6] : memref<8x32xf32, #tpu.memory_space<vmem>>, vector<8x32xf32>
    tpu.vector_store %arg4[%c0_5, %c0_6], %5 {strides = array<i32>} : memref<8x32xf32, #tpu.memory_space<vmem>>, vector<8x32xf32>,
    return
  }
  func.func @transform_0(%arg0: i32) -> (i32, i32) {
    %c0_i32 = arith.constant 0 : i32
    %c0_i32_0 = arith.constant 0 : i32
    return %arg0, %c0_i32 : i32, i32
  }
  func.func @transform_1(%arg0: i32) -> (i32, i32) {
    %c0_i32 = arith.constant 0 : i32
    %c0_i32_0 = arith.constant 0 : i32
    %c0_i32_1 = arith.constant 0 : i32
    return %c0_i32, %c0_i32_0 : i32, i32
  }
  func.func @transform_2(%arg0: i32) -> (i32, i32) {
    %c0_i32 = arith.constant 0 : i32
    %c0_i32_0 = arith.constant 0 : i32
    %c0_i32_1 = arith.constant 0 : i32
    return %c0_i32, %c0_i32_0 : i32, i32
  }
  func.func @transform_3(%arg0: i32) -> (i32, i32) {
    %c0_i32 = arith.constant 0 : i32
    %c0_i32_0 = arith.constant 0 : i32
    return %arg0, %c0_i32 : i32, i32
  }
}

</mosaic_0001>

<llo_original>
// kernel: tpu_custom_call.1
$region0: #{tpu_custom_call.1}
  #allocation0 [shape = 'u32[]', space=smem, size = 0x4, offset = 0x4, fixed_abs, tag = 'smem constant byte address 0x4 - core index']
  #allocation1 [shape = 'u32[72,128]{1,0:T(1,128)}', space=vmem, size = 0x9000, scoped, tag = 'internal scratch']
  %s0 = inlined_call_operand.vmem [shape: f32[24,16], index: 0, kind: input, shape index: {}]
  %s1 = inlined_call_operand.vmem [shape: f32[16,32], index: 1, kind: input, shape index: {}]
  %s2 = inlined_call_operand.vmem [shape: f32[1,32], index: 2, kind: input, shape index: {}]
  %s3 = inlined_call_operand.hbm [shape: f32[24,32], index: 3, kind: output, shape index: {}]
  %s4 = sld [smem:[#allocation0]]
  $region45: #{tpu_custom_call.1} parent=0
    _
  %s6 = ssub.s32 1, %s4
  %s7 = scalar_select 0, %s6, %s4
  $region1: #{tpu_custom_call.1} parent=0
    #allocation2 [shape = 'u8[8192]{0}', space=vmem, size = 0x2000, scoped, tag = 'output window, operand 0']
    #allocation3 [shape = 's32[2]{0}', space=sflag, size = 0x8, scoped, tag = 'scoped memory for tpu_custom_call.1']
    %8 = vsyncpa [#allocation3], 0
    %s9 = scalar_lea.sflag [#allocation3], 1
    %10 = vsyncpa %s9, 0
    loop: start=0, step=1, limit=5
    $region2: #{tpu_custom_call.1} parent=1 // loop_pre_header
      _
    $region3: #{tpu_custom_call.1} parent=1 // loop_header
      %s12 = sphi 0, %s16
      %p13 = scmp.ge.s32.totalorder %s12, 5
      %s22 = sphi 0, %s24
      %s25 = sphi 0, %s22
      %s26 = sphi 0, %s25
      %s42 = sphi 0, %s26
      %s46 = sphi 0, %s46
      %s48 = sphi 0, %s46
      %s49 = sphi 0, %s48
      %s63 = sphi 0, %s49
      %s67 = sphi 0, %s67
      %s69 = sphi 0, %s67
      %s70 = sphi 0, %s69
      %s84 = sphi 0, %s70
      %s90 = sphi 0, %s92
      %s93 = sphi 0, %s90
      %s94 = sphi 0, %s93
      %s110 = sphi 0, %s94
    $region4: #{tpu_custom_call.1} parent=1 // loop_header_branch
      %15 = sbr.rel (%p13) target = $region8
    $region5: #{tpu_custom_call.1} parent=1 // loop_body
      %s17 = ssub.s32 %s12, 1
      %s18 = ssub.s32 %s12, 2
      %s19 = sadd.s32 %s12, 1
      %s20 = ssub.s32 %s12, %s19
      %p21 = scmp.eq.s32.totalorder %s20, 0
      %s23 = sadd.s32 %s22, 1
      %s24 = scalar_select %p21, %s22, %s23
      %p27 = pneg %p21
      %p28 = scmp.eq.s32.totalorder %s12, 2
      %p29 = por %p27, %p28
      %p30 = scmp.ne.s32.totalorder %s22, %s25
      %p31 = scmp.eq.s32.totalorder %s12, 0
      %p32 = por %p30, %p31
      %p33 = scmp.ne.s32.totalorder %s22, %s25
      %p34 = scmp.eq.s32.totalorder %s17, 2
      %p35 = por %p33, %p34
      %p36 = scmp.ne.s32.totalorder %s25, %s26
      %p37 = scmp.eq.s32.totalorder %s17, 0
      %p38 = por %p36, %p37
      %p39 = scmp.ne.s32.totalorder %s25, %s26
      %p40 = scmp.eq.s32.totalorder %s18, 2
      %p41 = por %p39, %p40
      %p43 = scmp.ne.s32.totalorder %s26, %s42
      %p44 = scmp.eq.s32.totalorder %s18, 0
      %p45 = por %p43, %p44
      %s47 = sadd.s32 %s46, 1
      %p50 = scmp.eq.s32.totalorder %s12, 2
      %p51 = scmp.ne.s32.totalorder %s46, %s48
      %p52 = scmp.eq.s32.totalorder %s12, 0
      %p53 = por %p51, %p52
      %p54 = scmp.ne.s32.totalorder %s46, %s48
      %p55 = scmp.eq.s32.totalorder %s17, 2
      %p56 = por %p54, %p55
      %p57 = scmp.ne.s32.totalorder %s48, %s49
      %p58 = scmp.eq.s32.totalorder %s17, 0
      %p59 = por %p57, %p58
      %p60 = scmp.ne.s32.totalorder %s48, %s49
      %p61 = scmp.eq.s32.totalorder %s18, 2
      %p62 = por %p60, %p61
      %p64 = scmp.ne.s32.totalorder %s49, %s63
      %p65 = scmp.eq.s32.totalorder %s18, 0
      %p66 = por %p64, %p65
      %s68 = sadd.s32 %s67, 1
      %p71 = scmp.eq.s32.totalorder %s12, 2
      %p72 = scmp.ne.s32.totalorder %s67, %s69
      %p73 = scmp.eq.s32.totalorder %s12, 0
      %p74 = por %p72, %p73
      %p75 = scmp.ne.s32.totalorder %s67, %s69
      %p76 = scmp.eq.s32.totalorder %s17, 2
      %p77 = por %p75, %p76
      %p78 = scmp.ne.s32.totalorder %s69, %s70
      %p79 = scmp.eq.s32.totalorder %s17, 0
      %p80 = por %p78, %p79
      %p81 = scmp.ne.s32.totalorder %s69, %s70
      %p82 = scmp.eq.s32.totalorder %s18, 2
      %p83 = por %p81, %p82
      %p85 = scmp.ne.s32.totalorder %s70, %s84
      %p86 = scmp.eq.s32.totalorder %s18, 0
      %p87 = por %p85, %p86
      %s88 = ssub.s32 %s12, %s19
      %p89 = scmp.eq.s32.totalorder %s88, 0
      %s91 = sadd.s32 %s90, 1
      %s92 = scalar_select %p89, %s90, %s91
      %p95 = pneg %p89
      %p96 = scmp.eq.s32.totalorder %s12, 2
      %p97 = por %p95, %p96
      %p98 = scmp.ne.s32.totalorder %s90, %s93
      %p99 = scmp.eq.s32.totalorder %s12, 0
      %p100 = por %p98, %p99
      %p101 = scmp.ne.s32.totalorder %s90, %s93
      %p102 = scmp.eq.s32.totalorder %s17, 2
      %p103 = por %p101, %p102
      %p104 = scmp.ne.s32.totalorder %s93, %s94
      %p105 = scmp.eq.s32.totalorder %s17, 0
      %p106 = por %p104, %p105
      %p107 = scmp.ne.s32.totalorder %s93, %s94
      %p108 = scmp.eq.s32.totalorder %s18, 2
      %p109 = por %p107, %p108
      %p111 = scmp.ne.s32.totalorder %s94, %s110
      %p112 = scmp.eq.s32.totalorder %s18, 0
      %p113 = por %p111, %p112
      %p114 = scmp.le.s32.totalorder 1, %s12
      %p115 = scmp.lt.s32.totalorder %s12, 4
      %p116 = pnand %p114, %p115
      %p117 = pneg %p116
      // Predicated region
      $region9: #{tpu_custom_call.1} parent=5 // pred_check
        _
      $region10: #{tpu_custom_call.1} parent=5 // pred_check_branch
        %119 = sbr.rel (%p116) target = $region12
      $region11: #{tpu_custom_call.1} parent=5 // pred_region
        %s120 = ssub.s32 %s12, 1
        // Predicated region
        $region13: #{tpu_custom_call.1} parent=11 // pred_check
          %p121 = pneg %p59
        $region14: #{tpu_custom_call.1} parent=11 // pred_check_branch
          %123 = sbr.rel (%p121) target = $region16
        $region15: #{tpu_custom_call.1} parent=11 // pred_region
          _
        $region16: #{tpu_custom_call.1} parent=11 // pred_fallthru
          _
        // Predicated region
        $region17: #{tpu_custom_call.1} parent=11 // pred_check
          %p124 = pneg %p80
        $region18: #{tpu_custom_call.1} parent=11 // pred_check_branch
          %126 = sbr.rel (%p124) target = $region20
        $region19: #{tpu_custom_call.1} parent=11 // pred_region
          _
        $region20: #{tpu_custom_call.1} parent=11 // pred_fallthru
          _
      $region12: #{tpu_custom_call.1} parent=5 // pred_fallthru
        _
      %p127 = scmp.lt.s32.totalorder %s12, 3
      // Predicated region
      $region21: #{tpu_custom_call.1} parent=5 // pred_check
        %p128 = pneg %p127
      $region22: #{tpu_custom_call.1} parent=5 // pred_check_branch
        %130 = sbr.rel (%p128) target = $region24
      $region23: #{tpu_custom_call.1} parent=5 // pred_region
        // Predicated region
        $region25: #{tpu_custom_call.1} parent=23 // pred_check
          %p131 = pneg %p32
        $region26: #{tpu_custom_call.1} parent=23 // pred_check_branch
          %133 = sbr.rel (%p131) target = $region28
        $region27: #{tpu_custom_call.1} parent=23 // pred_region
          %p134 = scmp.lt.s32.totalorder %s12, 2
          %s135 = scalar_select %p134, %s12, 2
          %s136 = smul.addr %s135, 8
          %s137 = scalar_lea.vmem %s0, %s136
        $region28: #{tpu_custom_call.1} parent=23 // pred_fallthru
          _
      $region24: #{tpu_custom_call.1} parent=5 // pred_fallthru
        _
      %p138 = scmp.le.s32.totalorder 1, %s12
      %p139 = scmp.lt.s32.totalorder %s12, 4
      %p140 = pnand %p138, %p139
      %p141 = pneg %p140
      // Predicated region
      $region29: #{tpu_custom_call.1} parent=5 // pred_check
        _
      $region30: #{tpu_custom_call.1} parent=5 // pred_check_branch
        %143 = sbr.rel (%p140) target = $region32
      $region31: #{tpu_custom_call.1} parent=5 // pred_region
        %s144 = ssub.s32 %s12, 1
        %p145 = scmp.lt.s32.totalorder %s17, 2
        %s146 = scalar_select %p145, %s17, 2
        %s147 = smul.addr %s146, 8
        %s148 = scalar_lea.vmem %s0, %s147
        %p149 = pneg %p38
        %p150 = pneg %p35
        %p151 = pneg %p59
        %p152 = pneg %p56
        %p153 = pneg %p80
        %p154 = pneg %p77
        %p155 = pneg %p106
        %p156 = pneg %p103
        %s157 = sand.u32 %s93, 1
        %s158 = scalar_lea.sflag [#allocation3], %s157
        %s159 = sand.u32 %s93, 1
        %s160 = smul.addr %s159, 8
        %s161 = scalar_lea.vmem [#allocation2], %s160
        %p162 = scmp.lt.s32.totalorder %s17, 2
        %s163 = scalar_select %p162, %s17, 2
        %s164 = smul.addr %s163, 8
        %s165 = scalar_lea.vmem %s0, %s164
        %v166 = vld [vmem:[%s165] sm:$0xff]
        %v167 = vld [vmem:[%s1] sm:$0xff]
        %v168 = vld [vmem:[%s1 + $0x8] sm:$0xff]
        %v169 = vld [vmem:[%s2] sm:$0x1]
        %v171 = vperm.slane %v169, 0
        %vm173 = vcmask 130048
        %v175 = vsel %vm173, %v166, 0
        %177 = vmatpush.msra.mxu0 0.0
        %178 = vmatpush.msra.mxu0 0.0
        %179 = vmatpush.msra.mxu0 0.0
        %180 = vmatpush.msra.mxu0 0.0
        %181 = vmatpush.msra.mxu0 0.0
        %182 = vmatpush.msra.mxu0 0.0
        %183 = vmatpush.msra.mxu0 0.0
        %184 = vmatpush.msra.mxu0 0.0
        %185 = vmatpush.msra.mxu0 0.0
        %186 = vmatpush.msra.mxu0 0.0
        %187 = vmatpush.msra.mxu0 0.0
        %188 = vmatpush.msra.mxu0 0.0
        %189 = vmatpush.msra.mxu0 0.0
        %190 = vmatpush.msra.mxu0 0.0
        %191 = vmatpush.msra.mxu0 %v168
        %192 = vmatpush.msra.mxu0 %v167
        %193 = vmatmul.f32.gmra.mxu0 %v175
        %v194 = vpop.f32.mrf.mxu0
        %v195 = vadd.f32 %v171, %v194
        %196 = vdwg.mxu0
        %vm197 = vcmask 261120
        %198 = vst.msk [vmem:[%s161] sm:$0xff] %vm197, %v195
        %s199 = sand.u32 %s93, 1
        %s200 = scalar_lea.sflag [#allocation3], %s199
        %s201 = sand.u32 %s93, 1
        %s202 = smul.addr %s201, 8
        %s203 = scalar_lea.vmem [#allocation2], %s202
        // Predicated region
        $region33: #{tpu_custom_call.1} parent=31 // pred_check
          %p204 = pneg %p103
        $region34: #{tpu_custom_call.1} parent=31 // pred_check_branch
          %206 = sbr.rel (%p204) target = $region36
        $region35: #{tpu_custom_call.1} parent=31 // pred_region
          %208 = vsyncadd %s200, 0
          %s209 = smul.addr %s17, 8
          %s210 = scalar_lea.hbm %s3, %s209
          %s212 = sshll.u32 %s203, 4
          %s213 = int_to_ptr.vmem [resolvable:$true] %s212
          %s214 = sshll.u32 %s210, 4
          %s215 = int_to_ptr.hbm [resolvable:$true] %s214
          %217 = dma.vmem_to_hbm [thread:$0]  %s213, 128, %s215, %s200
        $region36: #{tpu_custom_call.1} parent=31 // pred_fallthru
          _
      $region32: #{tpu_custom_call.1} parent=5 // pred_fallthru
        _
      %p218 = scmp.le.s32.totalorder 2, %s12
      // Predicated region
      $region37: #{tpu_custom_call.1} parent=5 // pred_check
        %p219 = pneg %p218
      $region38: #{tpu_custom_call.1} parent=5 // pred_check_branch
        %221 = sbr.rel (%p219) target = $region40
      $region39: #{tpu_custom_call.1} parent=5 // pred_region
        %s222 = ssub.s32 %s12, 2
        // Predicated region
        $region41: #{tpu_custom_call.1} parent=39 // pred_check
          %p223 = pneg %p109
        $region42: #{tpu_custom_call.1} parent=39 // pred_check_branch
          %225 = sbr.rel (%p223) target = $region44
        $region43: #{tpu_custom_call.1} parent=39 // pred_region
          %s226 = sand.u32 %s94, 1
          %s227 = scalar_lea.sflag [#allocation3], %s226
          %s228 = sand.u32 %s94, 1
          %s229 = smul.addr %s228, 8
          %s230 = scalar_lea.vmem [#allocation2], %s229
          %232 = dma.done %s227, 128
        $region44: #{tpu_custom_call.1} parent=39 // pred_fallthru
          _
      $region40: #{tpu_custom_call.1} parent=5 // pred_fallthru
        _
    $region6: #{tpu_custom_call.1} parent=1 // loop_footer
      %s16 = sadd.s32 1, %s12
    $region7: #{tpu_custom_call.1} parent=1 // loop_footer_branch
      %11 = sbr.rel target = $region3
    $region8: #{tpu_custom_call.1} parent=1 // loop_exit
      _
    %233 = vsyncpa [#allocation3], 1
    %s234 = scalar_lea.sflag [#allocation3], 1
    %235 = vsyncpa %s234, 1

</llo_original>
